<compile_context>
chip_gen: v6e
topology: v6e:2x2x1
jax: 0.10.0
libtpu: 0.0.40
codegen_flags: <defaults>
</compile_context>

<pallas_src>
import math

import jax
import jax.numpy as jnp
from jax.experimental import pallas as pl
from jax.experimental.pallas import tpu as pltpu

LANES = 128


def _sublane_multiple(dtype):
    # Required second-minor block multiple per element width (f32:8, bf16/f16:16, int8:32).
    return {4: 8, 2: 16, 1: 32}.get(jnp.dtype(dtype).itemsize, 8)


def _device_kind():
    try:
        return jax.devices()[0].device_kind.lower()
    except Exception:
        return ""


def _block_budget_bytes():
    """Per-input, per-buffer block byte budget.

    Total pipelined VMEM ~= 2 inputs x 2 buffers x budget (+ <=64 KiB accumulators):
    8 MiB of buffers on v5e (16 MiB default scoped VMEM), 16 MiB on v6e/v7x (32 MiB).
    Unknown chips take the conservative v5e budget.
    """
    kind = _device_kind()
    if ("v6" in kind) or ("7" in kind):
        return 4 * 1024 * 1024
    return 2 * 1024 * 1024


def _tensorcore_split_info():
    """(num_splits, use_core_parallel) for the leading split grid axis."""
    kind = _device_kind()
    if "7" in kind:                        # v7x: 2 TensorCores per chip
        return 2, getattr(pltpu, "CORE_PARALLEL", None) is not None
    if ("v4" in kind) or ("v5p" in kind):  # megacore: "parallel" dims shard across 2 TCs
        return 2, False
    return 1, False                        # v5e / v6e: single TensorCore -> no split overhead


def _prep(x):
    """Flatten and keep the wire dtype narrow (the kernel upcasts per block)."""
    x = jnp.asarray(x)
    if x.dtype == jnp.bool_:
        x = x.astype(jnp.int8)             # 1 byte/elem on the wire, exact 0/1
    elif jnp.issubdtype(x.dtype, jnp.floating):
        if jnp.dtype(x.dtype).itemsize > 4:
            x = x.astype(jnp.float32)      # f64 is not TPU-native
    elif jnp.issubdtype(x.dtype, jnp.integer):
        if jnp.dtype(x.dtype).itemsize > 4:
            x = x.astype(jnp.int32)
    else:
        x = x.astype(jnp.float32)
    return x.reshape(-1)


def _make_dice_kernel(block_rows, acc_rows, inner_steps, valid_rows, mask_start, needs_mask):
    """Build the kernel with all tiling parameters baked in statically."""
    folds = block_rows // acc_rows

    def kernel(o_ref, t_ref, part_ref, acc_i_ref, acc_s_ref):
        p = pl.program_id(0)   # parallel split (one per TensorCore on multi-TC chips)
        i = pl.program_id(1)   # sequential reduction steps within this split

        @pl.when(i == 0)
        def _init():
            acc_i_ref[...] = jnp.zeros_like(acc_i_ref)
            acc_s_ref[...] = jnp.zeros_like(acc_s_ref)

        o = o_ref[...].astype(jnp.float32)
        t = t_ref[...].astype(jnp.float32)

        def accumulate(ov, tv):
            # Fold the block into small (acc_rows, 128) accumulators: the leading-axis
            # sums are plain vreg adds on the VPU (no XLU), and the accumulator
            # read-modify-write is a handful of vregs instead of the whole block.
            prod = (ov * tv).reshape(folds, acc_rows, LANES)
            both = (ov + tv).reshape(folds, acc_rows, LANES)
            acc_i_ref[...] += jnp.sum(prod, axis=0)
            acc_s_ref[...] += jnp.sum(both, axis=0)

        if needs_mask:
            g = p * inner_steps + i   # unclamped global block index

            @pl.when(g < mask_start)
            def _full_block():
                accumulate(o, t)      # full blocks: no masking cost

            @pl.when(g >= mask_start)
            def _edge_block():
                # Ragged last block and clamped duplicate blocks: rows at or past
                # `valid_rows` hold unspecified edge data -> zero them before use.
                row0 = g * block_rows
                rid = row0 + jax.lax.broadcasted_iota(jnp.int32, (block_rows, LANES), 0)
                valid = rid < valid_rows
                accumulate(jnp.where(valid, o, 0.0), jnp.where(valid, t, 0.0))
        else:
            accumulate(o, t)

        @pl.when(i == inner_steps - 1)
        def _emit():
            # Single cross-lane reduction per split, in the epilogue only.
            part_ref[0, 0] = jnp.sum(acc_i_ref[...])   # sum(output * target)
            part_ref[0, 1] = jnp.sum(acc_s_ref[...])   # sum(output) + sum(target)

    return kernel


def dice_loss(output, target, smooth=0.0, eps=1e-7):
    """Pallas TPU implementation of DiceLoss.forward. Returns a scalar f32."""
    assert output.shape == target.shape, (output.shape, target.shape)

    o = _prep(output)
    t = _prep(target)
    n = o.shape[0]

    # The (rows, 128) view below is a zero-copy reshape whenever n % 128 == 0 (the
    # common case).  Otherwise pad with < 128 zeros (neutral for both sums); this is
    # the only case that still costs an extra HBM pass.
    pad = (-n) % LANES
    if pad:
        o = jnp.pad(o, (0, pad))
        t = jnp.pad(t, (0, pad))
    rows = (n + pad) // LANES

    sub = max(_sublane_multiple(o.dtype), _sublane_multiple(t.dtype))
    if rows < sub:
        # Tiny input: not worth a kernel launch.
        of = o.astype(jnp.float32)
        tf = t.astype(jnp.float32)
        inter = jnp.sum(of * tf)
        denom = jnp.sum(of) + jnp.sum(tf)
        return (1.0 - (2.0 * inter + smooth) / (denom + smooth + eps)).astype(jnp.float32)

    o2 = o.reshape(rows, LANES)
    t2 = t.reshape(rows, LANES)

    # Block size: as large as the per-generation VMEM budget allows; always a multiple
    # of the sublane tile so the BlockSpec is legal even when `rows` is ragged
    # (edge rows past the array end are masked in-kernel).
    itemsize = max(jnp.dtype(o.dtype).itemsize, jnp.dtype(t.dtype).itemsize)
    max_rows = max(sub, (_block_budget_bytes() // (LANES * itemsize)) // sub * sub)
    block_rows = min(max_rows, -(-rows // sub) * sub)

    nblocks = -(-rows // block_rows)
    cores, use_core_parallel = _tensorcore_split_info()
    num_splits = cores if (cores > 1 and nblocks >= cores) else 1
    inner = -(-nblocks // num_splits)
    mask_start = rows // block_rows            # number of fully-valid blocks
    needs_mask = (num_splits * inner) > mask_start

    acc_rows = math.gcd(block_rows, 64)        # 8..64 rows -> <= 64 KiB of accumulators

    def in_map(p, i):
        # Duplicate out-of-range blocks from the split are clamped to the last real
        # block; the in-kernel mask zeroes their contribution.
        return (jnp.minimum(p * inner + i, nblocks - 1), 0)

    kernel = _make_dice_kernel(block_rows, acc_rows, inner, rows, mask_start, needs_mask)

    if num_splits > 1 and use_core_parallel:
        split_sem = getattr(pltpu, "CORE_PARALLEL", "parallel")   # v7x: shard across both TCs
    else:
        split_sem = "parallel"

    partials = pl.pallas_call(
        kernel,
        out_shape=jax.ShapeDtypeStruct((num_splits, 2), jnp.float32),
        grid_spec=pltpu.PrefetchScalarGridSpec(
            num_scalar_prefetch=0,
            grid=(num_splits, inner),
            in_specs=[
                pl.BlockSpec((block_rows, LANES), in_map),
                pl.BlockSpec((block_rows, LANES), in_map),
            ],
            out_specs=pl.BlockSpec((1, 2), lambda p, i: (p, 0), memory_space=pltpu.SMEM),
            scratch_shapes=[
                pltpu.VMEM((acc_rows, LANES), jnp.float32),  # sum(o*t) accumulator
                pltpu.VMEM((acc_rows, LANES), jnp.float32),  # sum(o)+sum(t) accumulator
            ],
        ),
        compiler_params=pltpu.CompilerParams(
            dimension_semantics=(split_sem, "arbitrary"),
        ),
    )(o2, t2)

    inter = jnp.sum(partials[:, 0])
    denom = jnp.sum(partials[:, 1])
    loss = 1.0 - (2.0 * inter + smooth) / (denom + smooth + eps)
    return loss.astype(jnp.float32)


def dice_loss_ref(output, target, smooth=0.0, eps=1e-7):
    o = jnp.asarray(output).astype(jnp.float32)
    t = jnp.asarray(target).astype(jnp.float32)
    return 1.0 - (2.0 * jnp.sum(o * t) + smooth) / (jnp.sum(o) + jnp.sum(t) + smooth + eps)


if __name__ == "__main__":
    key = jax.random.PRNGKey(0)
    k1, k2, k3, k4, k5, k6, k7, k8 = jax.random.split(key, 8)

    # 1) Small segmentation-style NCHW inputs (single block, no mask).
    out1 = jax.nn.sigmoid(jax.random.normal(k1, (2, 4, 16, 16), jnp.float32))
    tgt1 = (jax.random.uniform(k2, (2, 4, 16, 16)) > 0.5).astype(jnp.float32)
    got1 = jax.block_until_ready(dice_loss(out1, tgt1))
    ref1 = jax.block_until_ready(dice_loss_ref(out1, tgt1))
    assert jnp.allclose(got1, ref1, rtol=1e-4, atol=1e-6), (got1, ref1)

    # 2) Larger single-block input with a smooth term.
    out2 = jax.nn.sigmoid(jax.random.normal(k3, (2, 4, 192, 192), jnp.float32))
    tgt2 = (jax.random.uniform(k4, (2, 4, 192, 192)) > 0.5).astype(jnp.float32)
    got2 = jax.block_until_ready(dice_loss(out2, tgt2, smooth=1.0))
    ref2 = jax.block_until_ready(dice_loss_ref(out2, tgt2, smooth=1.0))
    assert jnp.allclose(got2, ref2, rtol=1e-4, atol=1e-6), (got2, ref2)

    # 3) Multi-block path with a ragged (masked) edge block.
    out3 = jax.nn.sigmoid(jax.random.normal(k5, (4, 4, 256, 300), jnp.float32))
    tgt3 = (jax.random.uniform(k6, (4, 4, 256, 300)) > 0.5).astype(jnp.float32)
    got3 = jax.block_until_ready(dice_loss(out3, tgt3, smooth=1.0))
    ref3 = jax.block_until_ready(dice_loss_ref(out3, tgt3, smooth=1.0))
    assert jnp.allclose(got3, ref3, rtol=1e-4, atol=1e-6), (got3, ref3)

    # 4) Boolean target stays int8 on the wire (narrow-dtype path).
    out4 = jax.nn.sigmoid(jax.random.normal(k7, (2, 4, 64, 64), jnp.float32))
    tgt4 = jax.random.uniform(k8, (2, 4, 64, 64)) > 0.5          # bool target
    got4 = jax.block_until_ready(dice_loss(out4, tgt4))
    ref4 = jax.block_until_ready(dice_loss_ref(out4, tgt4.astype(jnp.float32)))
    assert jnp.allclose(got4, ref4, rtol=1e-4, atol=1e-6), (got4, ref4)

    print("KERNEL_OK")
</pallas_src>

<mosaic_0001>
module attributes {stable_mosaic.version = 11 : i64} {
  func.func @kernel(%arg0: i32, %arg1: i32, %arg2: memref<16x128xf32, #tpu.memory_space<vmem>>, %arg3: memref<16x128xf32, #tpu.memory_space<vmem>>, %arg4: memref<1x2xf32, #tpu.memory_space<smem>>, %arg5: memref<16x128xf32, #tpu.memory_space<vmem>>, %arg6: memref<16x128xf32, #tpu.memory_space<vmem>>) attributes {dimension_semantics = [#tpu.dimension_semantics<parallel>, #tpu.dimension_semantics<arbitrary>], iteration_bounds = array<i64: 1, 1>, scalar_prefetch = 0 : i64, scratch_operands = 2 : i64, tpu.core_type = #tpu.core_type<tc>, window_params = [{transform_indices = @transform_0, window_bounds = array<i64: 16, 128>}, {transform_indices = @transform_1, window_bounds = array<i64: 16, 128>}, {transform_indices = @transform_2, window_bounds = array<i64: 1, 2>}]} {
    %c0_i32 = arith.constant 0 : i32
    %0 = arith.cmpi eq, %arg1, %c0_i32 : i32
    %1 = arith.extui %0 : i1 to i32
    %c0_i32_0 = arith.constant 0 : i32
    %2 = arith.cmpi ne, %1, %c0_i32_0 : i32
    scf.if %2 {
      %cst_15 = arith.constant 0.000000e+00 : f32
      %20 = vector.broadcast %cst_15 : f32 to vector<16x128xf32>
      %c0_16 = arith.constant 0 : index
      %c0_17 = arith.constant 0 : index
      %21 = vector.load %arg5[%c0_16, %c0_17] : memref<16x128xf32, #tpu.memory_space<vmem>>, vector<16x128xf32>
      tpu.vector_store %arg5[%c0_16, %c0_17], %20 {strides = array<i32>} : memref<16x128xf32, #tpu.memory_space<vmem>>, vector<16x128xf32>,
      %cst_18 = arith.constant 0.000000e+00 : f32
      %22 = vector.broadcast %cst_18 : f32 to vector<16x128xf32>
      %c0_19 = arith.constant 0 : index
      %c0_20 = arith.constant 0 : index
      %23 = vector.load %arg6[%c0_19, %c0_20] : memref<16x128xf32, #tpu.memory_space<vmem>>, vector<16x128xf32>
      tpu.vector_store %arg6[%c0_19, %c0_20], %22 {strides = array<i32>} : memref<16x128xf32, #tpu.memory_space<vmem>>, vector<16x128xf32>,
    } else {
    }
    %c0 = arith.constant 0 : index
    %c0_1 = arith.constant 0 : index
    %3 = vector.load %arg2[%c0, %c0_1] : memref<16x128xf32, #tpu.memory_space<vmem>>, vector<16x128xf32>
    %c0_2 = arith.constant 0 : index
    %c0_3 = arith.constant 0 : index
    %4 = vector.load %arg3[%c0_2, %c0_3] : memref<16x128xf32, #tpu.memory_space<vmem>>, vector<16x128xf32>
    %5 = arith.mulf %3, %4 : vector<16x128xf32>
    %6 = vector.shape_cast %5 : vector<16x128xf32> to vector<1x16x128xf32>
    %7 = arith.addf %3, %4 : vector<16x128xf32>
    %8 = vector.shape_cast %7 : vector<16x128xf32> to vector<1x16x128xf32>
    %c0_4 = arith.constant 0 : index
    %c0_5 = arith.constant 0 : index
    %9 = vector.load %arg5[%c0_4, %c0_5] : memref<16x128xf32, #tpu.memory_space<vmem>>, vector<16x128xf32>
    %cst = arith.constant dense<0.000000e+00> : vector<16x128xf32>
    %10 = vector.multi_reduction <add>, %6, %cst [0] : vector<1x16x128xf32> to vector<16x128xf32>
    %11 = arith.addf %9, %10 : vector<16x128xf32>
    %c0_6 = arith.constant 0 : index
    %c0_7 = arith.constant 0 : index
    %12 = vector.load %arg5[%c0_6, %c0_7] : memref<16x128xf32, #tpu.memory_space<vmem>>, vector<16x128xf32>
    tpu.vector_store %arg5[%c0_6, %c0_7], %11 {strides = array<i32>} : memref<16x128xf32, #tpu.memory_space<vmem>>, vector<16x128xf32>,
    %c0_8 = arith.constant 0 : index
    %c0_9 = arith.constant 0 : index
    %13 = vector.load %arg6[%c0_8, %c0_9] : memref<16x128xf32, #tpu.memory_space<vmem>>, vector<16x128xf32>
    %cst_10 = arith.constant dense<0.000000e+00> : vector<16x128xf32>
    %14 = vector.multi_reduction <add>, %8, %cst_10 [0] : vector<1x16x128xf32> to vector<16x128xf32>
    %15 = arith.addf %13, %14 : vector<16x128xf32>
    %c0_11 = arith.constant 0 : index
    %c0_12 = arith.constant 0 : index
    %16 = vector.load %arg6[%c0_11, %c0_12] : memref<16x128xf32, #tpu.memory_space<vmem>>, vector<16x128xf32>
    tpu.vector_store %arg6[%c0_11, %c0_12], %15 {strides = array<i32>} : memref<16x128xf32, #tpu.memory_space<vmem>>, vector<16x128xf32>,
    %c0_i32_13 = arith.constant 0 : i32
    %17 = arith.cmpi eq, %arg1, %c0_i32_13 : i32
    %18 = arith.extui %17 : i1 to i32
    %c0_i32_14 = arith.constant 0 : i32
    %19 = arith.cmpi ne, %18, %c0_i32_14 : i32
    scf.if %19 {
      %c0_15 = arith.constant 0 : index
      %c0_16 = arith.constant 0 : index
      %20 = vector.load %arg5[%c0_15, %c0_16] : memref<16x128xf32, #tpu.memory_space<vmem>>, vector<16x128xf32>
      %21 = vector.shape_cast %20 : vector<16x128xf32> to vector<1x16x128xf32>
      %cst_17 = arith.constant dense<0.000000e+00> : vector<1xf32>
      %22 = vector.multi_reduction <add>, %21, %cst_17 [1, 2] : vector<1x16x128xf32> to vector<1xf32>
      %23 = vector.shape_cast %22 : vector<1xf32> to vector<1x1x1xf32>
      %24 = vector.extract %23[0, 0, 0] : f32 from vector<1x1x1xf32>
      %c0_18 = arith.constant 0 : index
      %c0_19 = arith.constant 0 : index
      %25 = memref.load %arg4[%c0_18, %c0_19] : memref<1x2xf32, #tpu.memory_space<smem>>
      memref.store %24, %arg4[%c0_18, %c0_19] : memref<1x2xf32, #tpu.memory_space<smem>>
      %c0_20 = arith.constant 0 : index
      %c0_21 = arith.constant 0 : index
      %26 = vector.load %arg6[%c0_20, %c0_21] : memref<16x128xf32, #tpu.memory_space<vmem>>, vector<16x128xf32>
      %27 = vector.shape_cast %26 : vector<16x128xf32> to vector<1x16x128xf32>
      %cst_22 = arith.constant dense<0.000000e+00> : vector<1xf32>
      %28 = vector.multi_reduction <add>, %27, %cst_22 [1, 2] : vector<1x16x128xf32> to vector<1xf32>
      %29 = vector.shape_cast %28 : vector<1xf32> to vector<1x1x1xf32>
      %30 = vector.extract %29[0, 0, 0] : f32 from vector<1x1x1xf32>
      %c0_23 = arith.constant 0 : index
      %c1 = arith.constant 1 : index
      %31 = memref.load %arg4[%c0_23, %c1] : memref<1x2xf32, #tpu.memory_space<smem>>
      memref.store %30, %arg4[%c0_23, %c1] : memref<1x2xf32, #tpu.memory_space<smem>>
    } else {
    }
    return
  }
  func.func @transform_0(%arg0: i32, %arg1: i32) -> (i32, i32) {
    %c1_i32 = arith.constant 1 : i32
    %0 = arith.muli %arg0, %c1_i32 : i32
    %1 = arith.addi %0, %arg1 : i32
    %c0_i32 = arith.constant 0 : i32
    %2 = arith.minsi %1, %c0_i32 : i32
    %c0_i32_0 = arith.constant 0 : i32
    %c0_i32_1 = arith.constant 0 : i32
    return %2, %c0_i32_0 : i32, i32
  }
  func.func @transform_1(%arg0: i32, %arg1: i32) -> (i32, i32) {
    %c1_i32 = arith.constant 1 : i32
    %0 = arith.muli %arg0, %c1_i32 : i32
    %1 = arith.addi %0, %arg1 : i32
    %c0_i32 = arith.constant 0 : i32
    %2 = arith.minsi %1, %c0_i32 : i32
    %c0_i32_0 = arith.constant 0 : i32
    %c0_i32_1 = arith.constant 0 : i32
    return %2, %c0_i32_0 : i32, i32
  }
  func.func @transform_2(%arg0: i32, %arg1: i32) -> (i32, i32) {
    %c0_i32 = arith.constant 0 : i32
    %c0_i32_0 = arith.constant 0 : i32
    return %arg0, %c0_i32 : i32, i32
  }
}

</mosaic_0001>

<llo_original>
// kernel: tpu_custom_call.1
$region0: #{tpu_custom_call.1}
  #allocation0 [shape = 'u32[]', space=smem, size = 0x4, offset = 0x4, fixed_abs, tag = 'smem constant byte address 0x4 - core index']
  #allocation1 [shape = 'u32[144,128]{1,0:T(1,128)}', space=vmem, size = 0x12000, scoped, tag = 'internal scratch']
  #allocation2 [shape = 'f32[16,128]{1,0:T(8,128)}', space=vmem, size = 0x2000, scoped, tag = 'scratch operand']
  #allocation3 [shape = 'f32[16,128]{1,0:T(8,128)}', space=vmem, size = 0x2000, scoped, tag = 'scratch operand']
  %s0 = inlined_call_operand.hbm [shape: f32[16,128], index: 0, kind: input, shape index: {}]
  %s1 = inlined_call_operand.hbm [shape: f32[16,128], index: 1, kind: input, shape index: {}]
  %s2 = inlined_call_operand.hbm [shape: f32[1,2], index: 2, kind: output, shape index: {}]
  %s3 = sld [smem:[#allocation0]]
  $region34: #{tpu_custom_call.1} parent=0
    _
  %s5 = ssub.s32 1, %s3
  %s6 = scalar_select 0, %s5, %s3
  $region1: #{tpu_custom_call.1} parent=0
    #allocation4 [shape = 'u8[8192]{0}', space=vmem, size = 0x2000, scoped, tag = 'input window, operand 0, single buffered']
    #allocation5 [shape = 's32[1]{0}', space=sflag, size = 0x4, scoped, tag = 'scoped memory for tpu_custom_call.1']
    #allocation6 [shape = 's32[1]{0}', space=sflag, size = 0x4, scoped, tag = 'scoped memory for tpu_custom_call.1']
    #allocation7 [shape = 'u8[8192]{0}', space=vmem, size = 0x2000, scoped, tag = 'input window, operand 1, single buffered']
    #allocation8 [shape = 's32[1]{0}', space=sflag, size = 0x4, scoped, tag = 'scoped memory for tpu_custom_call.1']
    #allocation9 [shape = 'u8[512]{0}', space=smem, size = 0x200, scoped, tag = 'output window, operand 0, single buffered']
    %7 = vsyncpa [#allocation5], 0
    %8 = vsyncpa [#allocation8], 0
    %9 = vsyncpa [#allocation6], 0
    // Predicated region
    $region2: #{tpu_custom_call.1} parent=1 // pred_check
      _
    $region3: #{tpu_custom_call.1} parent=1 // pred_check_branch
      %11 = sbr.rel (0) target = $region5
    $region4: #{tpu_custom_call.1} parent=1 // pred_region
      %s12 = sadd.s32 0, 0
      %p13 = scmp.lt.s32.totalorder %s12, 0
      %s14 = scalar_select %p13, %s12, 0
      %s15 = smul.u32 2, %s14
      %s17 = ssub.s32 256, 256
      %18 = vsyncadd [#allocation5], %s17
      %s19 = smul.addr %s15, 128
      %s20 = scalar_lea.hbm %s0, %s19
      %s21 = sshll.u32 [#allocation4], 4
      %s22 = int_to_ptr.vmem [resolvable:$true] %s21
      %27 = dma.hbm_to_vmem [thread:$0]  %s20, 256, %s22, [#allocation5], 128, 128, 8
    $region5: #{tpu_custom_call.1} parent=1 // pred_fallthru
      _
    // Predicated region
    $region6: #{tpu_custom_call.1} parent=1 // pred_check
      _
    $region7: #{tpu_custom_call.1} parent=1 // pred_check_branch
      %29 = sbr.rel (0) target = $region9
    $region8: #{tpu_custom_call.1} parent=1 // pred_region
      %s30 = sadd.s32 0, 0
      %p31 = scmp.lt.s32.totalorder %s30, 0
      %s32 = scalar_select %p31, %s30, 0
      %s33 = smul.u32 2, %s32
      %s35 = ssub.s32 256, 256
      %36 = vsyncadd [#allocation8], %s35
      %s37 = smul.addr %s33, 128
      %s38 = scalar_lea.hbm %s1, %s37
      %s39 = sshll.u32 [#allocation7], 4
      %s40 = int_to_ptr.vmem [resolvable:$true] %s39
      %45 = dma.hbm_to_vmem [thread:$0]  %s38, 256, %s40, [#allocation8], 128, 128, 8
    $region9: #{tpu_custom_call.1} parent=1 // pred_fallthru
      _
    // Predicated region
    $region10: #{tpu_custom_call.1} parent=1 // pred_check
      _
    $region11: #{tpu_custom_call.1} parent=1 // pred_check_branch
      %47 = sbr.rel (0) target = $region13
    $region12: #{tpu_custom_call.1} parent=1 // pred_region
      %48 = dma.done [#allocation5], 256
    $region13: #{tpu_custom_call.1} parent=1 // pred_fallthru
      _
    // Predicated region
    $region14: #{tpu_custom_call.1} parent=1 // pred_check
      _
    $region15: #{tpu_custom_call.1} parent=1 // pred_check_branch
      %50 = sbr.rel (0) target = $region17
    $region16: #{tpu_custom_call.1} parent=1 // pred_region
      %51 = dma.done [#allocation8], 256
    $region17: #{tpu_custom_call.1} parent=1 // pred_fallthru
      _
    %s52 = sadd.s32 0, 0
    %p53 = scmp.lt.s32.totalorder %s52, 0
    %s54 = scalar_select %p53, %s52, 0
    %s55 = smul.u32 2, %s54
    %s56 = sadd.s32 0, 0
    %p57 = scmp.lt.s32.totalorder %s56, 0
    %s58 = scalar_select %p57, %s56, 0
    %s59 = smul.u32 2, %s58
    %p60 = scmp.eq.s32.totalorder 0, 0
    // Predicated region
    $region18: #{tpu_custom_call.1} parent=1 // pred_check
      %p61 = pneg %p60
    $region19: #{tpu_custom_call.1} parent=1 // pred_check_branch
      %63 = sbr.rel (%p61) target = $region21
    $region20: #{tpu_custom_call.1} parent=1 // pred_region
      %64 = vst [vmem:[#allocation2] sm:$0xff] 0.0
      %65 = vst [vmem:[#allocation2 + $0x8] sm:$0xff] 0.0
      %66 = vst [vmem:[#allocation3] sm:$0xff] 0.0
      %67 = vst [vmem:[#allocation3 + $0x8] sm:$0xff] 0.0
    $region21: #{tpu_custom_call.1} parent=1 // pred_fallthru
      _
    %v68 = vld [vmem:[#allocation4] sm:$0xff]
    %v69 = vld [vmem:[#allocation4 + $0x8] sm:$0xff]
    %v70 = vld [vmem:[#allocation7] sm:$0xff]
    %v71 = vld [vmem:[#allocation7 + $0x8] sm:$0xff]
    %v72 = vmul.f32 %v68, %v70
    %v73 = vmul.f32 %v69, %v71
    %v74 = vadd.f32 %v68, %v70
    %v75 = vadd.f32 %v69, %v71
    %v76 = vld [vmem:[#allocation2] sm:$0xff]
    %v77 = vld [vmem:[#allocation2 + $0x8] sm:$0xff]
    %v78 = vadd.f32 %v72, 0.0
    %v79 = vadd.f32 %v73, 0.0
    %v80 = vadd.f32 %v76, %v78
    %v81 = vadd.f32 %v77, %v79
    %82 = vst [vmem:[#allocation2] sm:$0xff] %v80
    %83 = vst [vmem:[#allocation2 + $0x8] sm:$0xff] %v81
    %v84 = vld [vmem:[#allocation3] sm:$0xff]
    %v85 = vld [vmem:[#allocation3 + $0x8] sm:$0xff]
    %v86 = vadd.f32 %v74, 0.0
    %v87 = vadd.f32 %v75, 0.0
    %v88 = vadd.f32 %v84, %v86
    %v89 = vadd.f32 %v85, %v87
    %90 = vst [vmem:[#allocation3] sm:$0xff] %v88
    %91 = vst [vmem:[#allocation3 + $0x8] sm:$0xff] %v89
    // Predicated region
    $region22: #{tpu_custom_call.1} parent=1 // pred_check
      %p92 = pneg %p60
    $region23: #{tpu_custom_call.1} parent=1 // pred_check_branch
      %94 = sbr.rel (%p92) target = $region25
    $region24: #{tpu_custom_call.1} parent=1 // pred_region
      %v95 = vld [vmem:[#allocation2] sm:$0xff]
      %v96 = vld [vmem:[#allocation2 + $0x8] sm:$0xff]
      %v97 = vadd.f32 %v95, %v96
      %98 = vadd.xlane.f32.xlu0 %v97
      %v99 = vpop.xlane.xlu0 %98
      %v100 = vrot.slane %v99, 4
      %v101 = vadd.f32 %v99, %v100
      %v102 = vrot.slane %v101, 2
      %v103 = vadd.f32 %v101, %v102
      %v104 = vrot.slane %v103, 1
      %v105 = vadd.f32 %v103, %v104
      %s106 = vtos %v105
      %s107 = scalar_lea.smem [#allocation9], 0
      %108 = sst [smem:[%s107]] %s106
      %v109 = vld [vmem:[#allocation3] sm:$0xff]
      %v110 = vld [vmem:[#allocation3 + $0x8] sm:$0xff]
      %v111 = vadd.f32 %v109, %v110
      %112 = vadd.xlane.f32.xlu0 %v111
      %v113 = vpop.xlane.xlu0 %112
      %v114 = vrot.slane %v113, 4
      %v115 = vadd.f32 %v113, %v114
      %v116 = vrot.slane %v115, 2
      %v117 = vadd.f32 %v115, %v116
      %v118 = vrot.slane %v117, 1
      %v119 = vadd.f32 %v117, %v118
      %s120 = vtos %v119
      %s121 = scalar_lea.smem [#allocation9], 1
      %122 = sst [smem:[%s121]] %s120
    $region25: #{tpu_custom_call.1} parent=1 // pred_fallthru
      _
    // Predicated region
    $region26: #{tpu_custom_call.1} parent=1 // pred_check
      _
    $region27: #{tpu_custom_call.1} parent=1 // pred_check_branch
      %124 = sbr.rel (0) target = $region29
    $region28: #{tpu_custom_call.1} parent=1 // pred_region
      %s126 = ssub.s32 16, 16
      %127 = vsyncadd [#allocation6], %s126
      %130 = dma.smem_to_hbm [#allocation9], 16, %s2, [#allocation6]
    $region29: #{tpu_custom_call.1} parent=1 // pred_fallthru
      _
    // Predicated region
    $region30: #{tpu_custom_call.1} parent=1 // pred_check
      _
    $region31: #{tpu_custom_call.1} parent=1 // pred_check_branch
      %132 = sbr.rel (0) target = $region33
    $region32: #{tpu_custom_call.1} parent=1 // pred_region
      %133 = dma.done [#allocation6], 16
    $region33: #{tpu_custom_call.1} parent=1 // pred_fallthru
      _
    %134 = sfence
    %135 = vsyncpa [#allocation5], 1
    %136 = vsyncpa [#allocation8], 1
    %137 = vsyncpa [#allocation6], 1

</llo_original>
